<compile_context>
chip_gen: v7x
topology: tpu7x:2x2x1
jax: 0.10.0
libtpu: 0.0.40
codegen_flags: <defaults>
</compile_context>

<pallas_src>
import jax
import jax.numpy as jnp
from jax.experimental import pallas as pl
from jax.experimental.pallas import tpu as pltpu

# ---- problem sizes (small, consistent with the module) ----
# ChannelAttentionModule uses reduction=16, so c1 must be >= 16 for a nonzero
# hidden width; pick c1 = 32 -> mid = 2.
N, C1, H, W = 2, 32, 16, 16
RED = 16
CM = C1 // RED                 # hidden width of the shared MLP (= 2)
HW = H * W                     # 256 (lane-dense)
KCONV = 7
PAD = KCONV // 2               # 3


def _sigmoid(v):
    # exp -> EUP; approx reciprocal -> EUP.  Shapes here are tiny anyway.
    return pl.reciprocal(1.0 + jnp.exp(-v), approx=True)


# --------------------------- fused CBAM kernel ------------------------------
def cbam_kernel(x_ref, w1t_ref, b1_ref, w2_ref, b2_ref, kall_ref, bc_ref,
                o_ref):
    # x_ref:    (1, C1, HW)   input image, channels on sublanes
    # w1t_ref:  (C1, CM)      Linear1 weight, transposed to [in, out]
    # b1_ref:   (1, CM)
    # w2_ref:   (C1, CM)      Linear2 weight [out, in]
    # b2_ref:   (C1, 1)
    # kall_ref: (2*HW, HW)    7x7 conv folded into a dense matrix
    #                         (rows 0..HW-1: avg map, HW..2HW-1: max map)
    # bc_ref:   (1, 1)        conv bias
    x = x_ref[0]                                            # (C1, HW)

    # ---- channel attention --------------------------------------------
    p_avg = jnp.mean(x, axis=1, keepdims=True)              # (C1, 1)
    p_max = jnp.max(x, axis=1, keepdims=True)               # (C1, 1)
    # shared MLP on each pooled vector (VPU broadcast + reduce; shapes tiny)
    h_avg = jnp.maximum(
        jnp.sum(w1t_ref[...] * p_avg, axis=0, keepdims=True) + b1_ref[...],
        0.0)                                                # (1, CM)
    h_max = jnp.maximum(
        jnp.sum(w1t_ref[...] * p_max, axis=0, keepdims=True) + b1_ref[...],
        0.0)                                                # (1, CM)
    h = h_avg + h_max                                       # (1, CM)
    # MLP(avg)+MLP(max) = W2 @ (relu_avg + relu_max) + 2*b2
    o = jnp.sum(w2_ref[...] * h, axis=1, keepdims=True)     # (C1, 1)
    ca = _sigmoid(o + 2.0 * b2_ref[...])                    # (C1, 1)
    y = ca * x                                              # (C1, HW)

    # ---- spatial attention ---------------------------------------------
    s_avg = jnp.mean(y, axis=0, keepdims=True)              # (1, HW)
    s_max = jnp.max(y, axis=0, keepdims=True)               # (1, HW)
    s = jnp.concatenate([s_avg, s_max], axis=1)             # (1, 2*HW)
    sal = jnp.dot(s, kall_ref[...],
                  preferred_element_type=jnp.float32) + bc_ref[...]  # (1, HW)
    o_ref[0] = _sigmoid(sal) * y                            # (C1, HW)


# ------------- fold the 7x7 conv (2->1 ch, pad 3) into a dense matrix -------
def conv7_to_matrix(wc):
    """wc: (1, 2, 7, 7) OIHW weight -> (2*HW, HW) matrix K with
    sal_flat = [s_avg_flat, s_max_flat] @ K  (exact, zero-padded conv)."""
    idx = jnp.arange(HW)
    oh, ow = idx // W, idx % W                  # output positions i
    jh, jw = oh, ow                             # input positions j (same set)
    dy = jh[:, None] - oh[None, :] + PAD        # (HW_in, HW_out)
    dx = jw[:, None] - ow[None, :] + PAD
    valid = (dy >= 0) & (dy < KCONV) & (dx >= 0) & (dx < KCONV)
    dyc = jnp.clip(dy, 0, KCONV - 1)
    dxc = jnp.clip(dx, 0, KCONV - 1)
    k_avg = jnp.where(valid, wc[0, 0][dyc, dxc], 0.0)
    k_max = jnp.where(valid, wc[0, 1][dyc, dxc], 0.0)
    return jnp.concatenate([k_avg, k_max], axis=0).astype(jnp.float32)


def prepare_params(params):
    w1, b1, w2, b2, wc, bc = params
    return (jnp.transpose(w1, (1, 0)),          # (C1, CM)
            b1.reshape(1, CM),
            w2,                                 # (C1, CM)
            b2.reshape(C1, 1),
            conv7_to_matrix(wc),                # (2*HW, HW)
            bc.reshape(1, 1))


# ------------------------------ full forward --------------------------------
def cbam_forward(x_nchw, kparams):
    w1t, b1, w2, b2, kall, bc = kparams
    x = x_nchw.reshape(N, C1, HW)               # NCHW -> (N, C, HW), free
    out = pl.pallas_call(
        cbam_kernel,
        out_shape=jax.ShapeDtypeStruct((N, C1, HW), jnp.float32),
        grid=(N,),
        in_specs=[
            pl.BlockSpec((1, C1, HW), lambda n: (n, 0, 0)),
            pl.BlockSpec((C1, CM), lambda n: (0, 0)),
            pl.BlockSpec((1, CM), lambda n: (0, 0)),
            pl.BlockSpec((C1, CM), lambda n: (0, 0)),
            pl.BlockSpec((C1, 1), lambda n: (0, 0)),
            pl.BlockSpec((2 * HW, HW), lambda n: (0, 0)),
            pl.BlockSpec((1, 1), lambda n: (0, 0)),
        ],
        out_specs=pl.BlockSpec((1, C1, HW), lambda n: (n, 0, 0)),
        compiler_params=pltpu.CompilerParams(
            dimension_semantics=("parallel",),
            vmem_limit_bytes=16 * 1024 * 1024),
    )(x, w1t, b1, w2, b2, kall, bc)
    return out.reshape(N, C1, H, W)             # back to NCHW, free


# ------------------ deterministic parameter initialization ------------------
def init_params(key):
    ks = jax.random.split(key, 6)
    w1 = 0.3 * jax.random.normal(ks[0], (CM, C1), jnp.float32)   # Linear1 [out,in]
    b1 = 0.05 * jax.random.normal(ks[1], (CM,), jnp.float32)
    w2 = 0.3 * jax.random.normal(ks[2], (C1, CM), jnp.float32)   # Linear2 [out,in]
    b2 = 0.05 * jax.random.normal(ks[3], (C1,), jnp.float32)
    wc = 0.2 * jax.random.normal(ks[4], (1, 2, KCONV, KCONV), jnp.float32)
    bc = 0.05 * jax.random.normal(ks[5], (1,), jnp.float32)
    return (w1, b1, w2, b2, wc, bc)


# ----------------------- pure-JAX reference (for check) ---------------------
def ref_forward(x, params):
    w1, b1, w2, b2, wc, bc = params
    avg = jnp.mean(x, axis=(2, 3))                              # (N, C1)
    mx = jnp.max(x, axis=(2, 3))                                # (N, C1)

    def mlp(v):
        hh = jnp.maximum(v @ w1.T + b1, 0.0)
        return hh @ w2.T + b2

    ca = jax.nn.sigmoid(mlp(avg) + mlp(mx))[:, :, None, None]
    y = ca * x
    s = jnp.concatenate([jnp.mean(y, axis=1, keepdims=True),
                         jnp.max(y, axis=1, keepdims=True)], axis=1)
    conv = jax.lax.conv_general_dilated(
        s, wc, (1, 1), [(PAD, PAD), (PAD, PAD)],
        dimension_numbers=('NCHW', 'OIHW', 'NCHW'))
    sa = jax.nn.sigmoid(conv + bc[None, :, None, None])
    return sa * y


if __name__ == "__main__":
    key = jax.random.PRNGKey(0)
    kx, kp = jax.random.split(key)
    x = jax.random.normal(kx, (N, C1, H, W), jnp.float32)       # NCHW input
    params = init_params(kp)
    kparams = prepare_params(params)

    out = jax.jit(cbam_forward)(x, kparams)
    out = jax.block_until_ready(out)

    ref = ref_forward(x, params)
    assert out.shape == (N, C1, H, W), out.shape
    err = float(jnp.max(jnp.abs(out - ref)))
    assert err < 2e-2, f"max abs err {err}"
    print("KERNEL_OK")
</pallas_src>

<mosaic_0001>
module attributes {stable_mosaic.version = 11 : i64} {
  func.func @cbam_kernel(%arg0: i32, %arg1: memref<1x32x256xf32, #tpu.memory_space<vmem>>, %arg2: memref<32x2xf32, #tpu.memory_space<vmem>>, %arg3: memref<1x2xf32, #tpu.memory_space<vmem>>, %arg4: memref<32x2xf32, #tpu.memory_space<vmem>>, %arg5: memref<32x1xf32, #tpu.memory_space<vmem>>, %arg6: memref<512x256xf32, #tpu.memory_space<vmem>>, %arg7: memref<1x1xf32, #tpu.memory_space<vmem>>, %arg8: memref<1x32x256xf32, #tpu.memory_space<vmem>>) attributes {dimension_semantics = [#tpu.dimension_semantics<parallel>], iteration_bounds = array<i64: 2>, scalar_prefetch = 0 : i64, scratch_operands = 0 : i64, tpu.core_type = #tpu.core_type<tc>, window_params = [{transform_indices = @transform_0, window_bounds = array<i64: 1, 32, 256>}, {pipeline_mode = #tpu.pipeline_mode<synchronous>, transform_indices = @transform_1, window_bounds = array<i64: 32, 2>}, {pipeline_mode = #tpu.pipeline_mode<synchronous>, transform_indices = @transform_2, window_bounds = array<i64: 1, 2>}, {pipeline_mode = #tpu.pipeline_mode<synchronous>, transform_indices = @transform_3, window_bounds = array<i64: 32, 2>}, {pipeline_mode = #tpu.pipeline_mode<synchronous>, transform_indices = @transform_4, window_bounds = array<i64: 32, 1>}, {pipeline_mode = #tpu.pipeline_mode<synchronous>, transform_indices = @transform_5, window_bounds = array<i64: 512, 256>}, {pipeline_mode = #tpu.pipeline_mode<synchronous>, transform_indices = @transform_6, window_bounds = array<i64: 1, 1>}, {transform_indices = @transform_7, window_bounds = array<i64: 1, 32, 256>}]} {
    %c0 = arith.constant 0 : index
    %c0_0 = arith.constant 0 : index
    %c0_1 = arith.constant 0 : index
    %0 = vector.load %arg1[%c0, %c0_0, %c0_1] : memref<1x32x256xf32, #tpu.memory_space<vmem>>, vector<1x32x256xf32>
    %1 = vector.shape_cast %0 : vector<1x32x256xf32> to vector<32x256xf32>
    %cst = arith.constant dense<0.000000e+00> : vector<32xf32>
    %2 = vector.multi_reduction <add>, %1, %cst [1] : vector<32x256xf32> to vector<32xf32>
    %3 = vector.shape_cast %2 : vector<32xf32> to vector<32x1xf32>
    %cst_2 = arith.constant 2.560000e+02 : f32
    %4 = vector.broadcast %cst_2 : f32 to vector<32x1xf32>
    %5 = arith.divf %3, %4 : vector<32x1xf32>
    %cst_3 = arith.constant dense<0xFF800000> : vector<32xf32>
    %6 = vector.multi_reduction <maximumf>, %1, %cst_3 [1] : vector<32x256xf32> to vector<32xf32>
    %7 = vector.shape_cast %6 : vector<32xf32> to vector<32x1xf32>
    %c0_4 = arith.constant 0 : index
    %c0_5 = arith.constant 0 : index
    %8 = vector.load %arg2[%c0_4, %c0_5] : memref<32x2xf32, #tpu.memory_space<vmem>>, vector<32x2xf32>
    %9 = vector.broadcast %5 : vector<32x1xf32> to vector<32x2xf32>
    %10 = arith.mulf %8, %9 : vector<32x2xf32>
    %cst_6 = arith.constant dense<0.000000e+00> : vector<2xf32>
    %11 = vector.multi_reduction <add>, %10, %cst_6 [0] : vector<32x2xf32> to vector<2xf32>
    %12 = vector.shape_cast %11 : vector<2xf32> to vector<1x2xf32>
    %c0_7 = arith.constant 0 : index
    %c0_8 = arith.constant 0 : index
    %13 = vector.load %arg3[%c0_7, %c0_8] : memref<1x2xf32, #tpu.memory_space<vmem>>, vector<1x2xf32>
    %14 = arith.addf %12, %13 : vector<1x2xf32>
    %cst_9 = arith.constant 0.000000e+00 : f32
    %15 = vector.broadcast %cst_9 : f32 to vector<1x2xf32>
    %16 = arith.maximumf %14, %15 : vector<1x2xf32>
    %c0_10 = arith.constant 0 : index
    %c0_11 = arith.constant 0 : index
    %17 = vector.load %arg2[%c0_10, %c0_11] : memref<32x2xf32, #tpu.memory_space<vmem>>, vector<32x2xf32>
    %18 = vector.broadcast %7 : vector<32x1xf32> to vector<32x2xf32>
    %19 = arith.mulf %17, %18 : vector<32x2xf32>
    %cst_12 = arith.constant dense<0.000000e+00> : vector<2xf32>
    %20 = vector.multi_reduction <add>, %19, %cst_12 [0] : vector<32x2xf32> to vector<2xf32>
    %21 = vector.shape_cast %20 : vector<2xf32> to vector<1x2xf32>
    %c0_13 = arith.constant 0 : index
    %c0_14 = arith.constant 0 : index
    %22 = vector.load %arg3[%c0_13, %c0_14] : memref<1x2xf32, #tpu.memory_space<vmem>>, vector<1x2xf32>
    %23 = arith.addf %21, %22 : vector<1x2xf32>
    %cst_15 = arith.constant 0.000000e+00 : f32
    %24 = vector.broadcast %cst_15 : f32 to vector<1x2xf32>
    %25 = arith.maximumf %23, %24 : vector<1x2xf32>
    %26 = arith.addf %16, %25 : vector<1x2xf32>
    %c0_16 = arith.constant 0 : index
    %c0_17 = arith.constant 0 : index
    %27 = vector.load %arg4[%c0_16, %c0_17] : memref<32x2xf32, #tpu.memory_space<vmem>>, vector<32x2xf32>
    %28 = vector.broadcast %26 : vector<1x2xf32> to vector<32x2xf32>
    %29 = arith.mulf %27, %28 : vector<32x2xf32>
    %cst_18 = arith.constant dense<0.000000e+00> : vector<32xf32>
    %30 = vector.multi_reduction <add>, %29, %cst_18 [1] : vector<32x2xf32> to vector<32xf32>
    %31 = vector.shape_cast %30 : vector<32xf32> to vector<32x1xf32>
    %c0_19 = arith.constant 0 : index
    %c0_20 = arith.constant 0 : index
    %32 = vector.load %arg5[%c0_19, %c0_20] : memref<32x1xf32, #tpu.memory_space<vmem>>, vector<32x1xf32>
    %cst_21 = arith.constant 2.000000e+00 : f32
    %33 = vector.broadcast %cst_21 : f32 to vector<32x1xf32>
    %34 = arith.mulf %33, %32 : vector<32x1xf32>
    %35 = arith.addf %31, %34 : vector<32x1xf32>
    %cst_22 = arith.constant 0.000000e+00 : f32
    %36 = vector.broadcast %cst_22 : f32 to vector<32x1xf32>
    %37 = arith.subf %36, %35 : vector<32x1xf32>
    %38 = math.exp %37 : vector<32x1xf32>
    %cst_23 = arith.constant 1.000000e+00 : f32
    %39 = vector.broadcast %cst_23 : f32 to vector<32x1xf32>
    %40 = arith.addf %39, %38 : vector<32x1xf32>
    %41 = tpu.reciprocal %40 {approx = true} : vector<32x1xf32> -> vector<32x1xf32>
    %42 = vector.broadcast %41 : vector<32x1xf32> to vector<32x256xf32>
    %43 = arith.mulf %42, %1 : vector<32x256xf32>
    %cst_24 = arith.constant dense<0.000000e+00> : vector<256xf32>
    %44 = vector.multi_reduction <add>, %43, %cst_24 [0] : vector<32x256xf32> to vector<256xf32>
    %45 = vector.shape_cast %44 : vector<256xf32> to vector<1x256xf32>
    %cst_25 = arith.constant 3.200000e+01 : f32
    %46 = vector.broadcast %cst_25 : f32 to vector<1x256xf32>
    %47 = arith.divf %45, %46 : vector<1x256xf32>
    %cst_26 = arith.constant dense<0xFF800000> : vector<256xf32>
    %48 = vector.multi_reduction <maximumf>, %43, %cst_26 [0] : vector<32x256xf32> to vector<256xf32>
    %49 = vector.shape_cast %48 : vector<256xf32> to vector<1x256xf32>
    %50 = tpu.concatenate %47, %49 in 1 : vector<1x256xf32>, vector<1x256xf32> -> vector<1x512xf32>
    %c0_27 = arith.constant 0 : index
    %c0_28 = arith.constant 0 : index
    %51 = vector.load %arg6[%c0_27, %c0_28] : memref<512x256xf32, #tpu.memory_space<vmem>>, vector<512x256xf32>
    %cst_29 = arith.constant dense<0.000000e+00> : vector<1x256xf32>
    %52 = tpu.matmul %50, %51, %cst_29 {dimension_numbers = #tpu.dot_dimension_numbers<[1], [0], [0], [1], [0, 0, 1, 1], [], []>} : vector<1x512xf32>, vector<512x256xf32>, vector<1x256xf32> -> vector<1x256xf32>
    %c0_30 = arith.constant 0 : index
    %c0_31 = arith.constant 0 : index
    %53 = vector.load %arg7[%c0_30, %c0_31] : memref<1x1xf32, #tpu.memory_space<vmem>>, vector<1x1xf32>
    %54 = vector.broadcast %53 : vector<1x1xf32> to vector<1x256xf32>
    %55 = arith.addf %52, %54 : vector<1x256xf32>
    %cst_32 = arith.constant 0.000000e+00 : f32
    %56 = vector.broadcast %cst_32 : f32 to vector<1x256xf32>
    %57 = arith.subf %56, %55 : vector<1x256xf32>
    %58 = math.exp %57 : vector<1x256xf32>
    %cst_33 = arith.constant 1.000000e+00 : f32
    %59 = vector.broadcast %cst_33 : f32 to vector<1x256xf32>
    %60 = arith.addf %59, %58 : vector<1x256xf32>
    %61 = tpu.reciprocal %60 {approx = true} : vector<1x256xf32> -> vector<1x256xf32>
    %62 = vector.broadcast %61 : vector<1x256xf32> to vector<32x256xf32>
    %63 = arith.mulf %62, %43 : vector<32x256xf32>
    %c0_34 = arith.constant 0 : index
    %c0_35 = arith.constant 0 : index
    %c0_36 = arith.constant 0 : index
    %64 = vector.load %arg8[%c0_34, %c0_35, %c0_36] : memref<1x32x256xf32, #tpu.memory_space<vmem>>, vector<1x32x256xf32>
    %65 = vector.shape_cast %64 : vector<1x32x256xf32> to vector<32x256xf32>
    %66 = vector.shape_cast %63 : vector<32x256xf32> to vector<1x32x256xf32>
    tpu.vector_store %arg8[%c0_34, %c0_35, %c0_36], %66 {strides = array<i32>} : memref<1x32x256xf32, #tpu.memory_space<vmem>>, vector<1x32x256xf32>,
    return
  }
  func.func @transform_0(%arg0: i32) -> (i32, i32, i32) {
    %c0_i32 = arith.constant 0 : i32
    %c0_i32_0 = arith.constant 0 : i32
    %c0_i32_1 = arith.constant 0 : i32
    return %arg0, %c0_i32, %c0_i32_0 : i32, i32, i32
  }
  func.func @transform_1(%arg0: i32) -> (i32, i32) {
    %c0_i32 = arith.constant 0 : i32
    %c0_i32_0 = arith.constant 0 : i32
    %c0_i32_1 = arith.constant 0 : i32
    return %c0_i32, %c0_i32_0 : i32, i32
  }
  func.func @transform_2(%arg0: i32) -> (i32, i32) {
    %c0_i32 = arith.constant 0 : i32
    %c0_i32_0 = arith.constant 0 : i32
    %c0_i32_1 = arith.constant 0 : i32
    return %c0_i32, %c0_i32_0 : i32, i32
  }
  func.func @transform_3(%arg0: i32) -> (i32, i32) {
    %c0_i32 = arith.constant 0 : i32
    %c0_i32_0 = arith.constant 0 : i32
    %c0_i32_1 = arith.constant 0 : i32
    return %c0_i32, %c0_i32_0 : i32, i32
  }
  func.func @transform_4(%arg0: i32) -> (i32, i32) {
    %c0_i32 = arith.constant 0 : i32
    %c0_i32_0 = arith.constant 0 : i32
    %c0_i32_1 = arith.constant 0 : i32
    return %c0_i32, %c0_i32_0 : i32, i32
  }
  func.func @transform_5(%arg0: i32) -> (i32, i32) {
    %c0_i32 = arith.constant 0 : i32
    %c0_i32_0 = arith.constant 0 : i32
    %c0_i32_1 = arith.constant 0 : i32
    return %c0_i32, %c0_i32_0 : i32, i32
  }
  func.func @transform_6(%arg0: i32) -> (i32, i32) {
    %c0_i32 = arith.constant 0 : i32
    %c0_i32_0 = arith.constant 0 : i32
    %c0_i32_1 = arith.constant 0 : i32
    return %c0_i32, %c0_i32_0 : i32, i32
  }
  func.func @transform_7(%arg0: i32) -> (i32, i32, i32) {
    %c0_i32 = arith.constant 0 : i32
    %c0_i32_0 = arith.constant 0 : i32
    %c0_i32_1 = arith.constant 0 : i32
    return %arg0, %c0_i32, %c0_i32_0 : i32, i32, i32
  }
}

</mosaic_0001>

<llo_original>
// kernel: cbam_forward.1
$region0: #{cbam_forward.1}
  #allocation0 [shape = 'u32[]', space=smem, size = 0x4, offset = 0x4, fixed_abs, tag = 'smem constant byte address 0x4 - core index']
  #allocation1 [shape = 'u32[144,128]{1,0:T(1,128)}', space=vmem, size = 0x12000, scoped, tag = 'internal scratch']
  #allocation2 [shape = 'f32[1,1]{1,0:T(1,128)S(1)}', space=vmem, size = 0x200, scoped, tag = 'scoped memory for cbam_forward.1']
  %s0 = inlined_call_operand.vmem [shape: f32[2,32,256], index: 0, kind: input, shape index: {}]
  %s1 = inlined_call_operand.vmem [shape: f32[32,2], index: 1, kind: input, shape index: {}]
  %s2 = inlined_call_operand.vmem [shape: f32[1,2], index: 2, kind: input, shape index: {}]
  %s3 = inlined_call_operand.vmem [shape: f32[32,2], index: 3, kind: input, shape index: {}]
  %s4 = inlined_call_operand.vmem [shape: f32[32,1], index: 4, kind: input, shape index: {}]
  %s5 = inlined_call_operand.hbm [shape: f32[512,256], index: 5, kind: input, shape index: {}]
  %s6 = inlined_call_operand.<no memory space> [shape: f32[1,1], index: 6, kind: input, shape index: {}]
  %s7 = inlined_call_operand.vmem [shape: f32[2,32,256], index: 7, kind: output, shape index: {}]
  %s8 = sld [smem:[#allocation0]]
  $region65: #{cbam_forward.1} parent=0
    _
  %s10 = ssub.s32 1, %s8
  %s11 = scalar_select 0, %s10, %s8
  %v12 = vstv %s6
  %13 = vst [vmem:[#allocation2] sm:$0x1] %v12
  $region1: #{cbam_forward.1} parent=0
    #allocation3 [shape = 'u8[524288]{0}', space=vmem, size = 0x80000, scoped, tag = 'input window, operand 5, single buffered']
    #allocation4 [shape = 's32[2]{0}', space=sflag, size = 0x8, scoped, tag = 'scoped memory for cbam_forward.1']
    %14 = vsyncpa [#allocation4], 0
    loop: start=0, step=1, limit=4
    $region2: #{cbam_forward.1} parent=1 // loop_pre_header
      _
    $region3: #{cbam_forward.1} parent=1 // loop_header
      %s16 = sphi 0, %s20
      %p17 = scmp.ge.s32.totalorder %s16, 4
      %s26 = sphi 0, %s28
      %s29 = sphi 0, %s26
      %s30 = sphi 0, %s29
      %s46 = sphi 0, %s30
      %s50 = sphi 0, %s50
      %s52 = sphi 0, %s50
      %s53 = sphi 0, %s52
      %s67 = sphi 0, %s53
      %s71 = sphi 0, %s71
      %s73 = sphi 0, %s71
      %s74 = sphi 0, %s73
      %s88 = sphi 0, %s74
      %s92 = sphi 0, %s92
      %s94 = sphi 0, %s92
      %s95 = sphi 0, %s94
      %s109 = sphi 0, %s95
      %s113 = sphi 0, %s113
      %s115 = sphi 0, %s113
      %s116 = sphi 0, %s115
      %s130 = sphi 0, %s116
      %s134 = sphi 0, %s134
      %s136 = sphi 0, %s134
      %s137 = sphi 0, %s136
      %s151 = sphi 0, %s137
      %s155 = sphi 0, %s155
      %s157 = sphi 0, %s155
      %s158 = sphi 0, %s157
      %s172 = sphi 0, %s158
      %s178 = sphi 0, %s180
      %s181 = sphi 0, %s178
      %s182 = sphi 0, %s181
      %s198 = sphi 0, %s182
    $region4: #{cbam_forward.1} parent=1 // loop_header_branch
      %19 = sbr.rel (%p17) target = $region8
    $region5: #{cbam_forward.1} parent=1 // loop_body
      %s21 = ssub.s32 %s16, 1
      %s22 = ssub.s32 %s16, 2
      %s23 = sadd.s32 %s16, 1
      %s24 = ssub.s32 %s16, %s23
      %p25 = scmp.eq.s32.totalorder %s24, 0
      %s27 = sadd.s32 %s26, 1
      %s28 = scalar_select %p25, %s26, %s27
      %p31 = pneg %p25
      %p32 = scmp.eq.s32.totalorder %s16, 1
      %p33 = por %p31, %p32
      %p34 = scmp.ne.s32.totalorder %s26, %s29
      %p35 = scmp.eq.s32.totalorder %s16, 0
      %p36 = por %p34, %p35
      %p37 = scmp.ne.s32.totalorder %s26, %s29
      %p38 = scmp.eq.s32.totalorder %s21, 1
      %p39 = por %p37, %p38
      %p40 = scmp.ne.s32.totalorder %s29, %s30
      %p41 = scmp.eq.s32.totalorder %s21, 0
      %p42 = por %p40, %p41
      %p43 = scmp.ne.s32.totalorder %s29, %s30
      %p44 = scmp.eq.s32.totalorder %s22, 1
      %p45 = por %p43, %p44
      %p47 = scmp.ne.s32.totalorder %s30, %s46
      %p48 = scmp.eq.s32.totalorder %s22, 0
      %p49 = por %p47, %p48
      %s51 = sadd.s32 %s50, 1
      %p54 = scmp.eq.s32.totalorder %s16, 1
      %p55 = scmp.ne.s32.totalorder %s50, %s52
      %p56 = scmp.eq.s32.totalorder %s16, 0
      %p57 = por %p55, %p56
      %p58 = scmp.ne.s32.totalorder %s50, %s52
      %p59 = scmp.eq.s32.totalorder %s21, 1
      %p60 = por %p58, %p59
      %p61 = scmp.ne.s32.totalorder %s52, %s53
      %p62 = scmp.eq.s32.totalorder %s21, 0
      %p63 = por %p61, %p62
      %p64 = scmp.ne.s32.totalorder %s52, %s53
      %p65 = scmp.eq.s32.totalorder %s22, 1
      %p66 = por %p64, %p65
      %p68 = scmp.ne.s32.totalorder %s53, %s67
      %p69 = scmp.eq.s32.totalorder %s22, 0
      %p70 = por %p68, %p69
      %s72 = sadd.s32 %s71, 1
      %p75 = scmp.eq.s32.totalorder %s16, 1
      %p76 = scmp.ne.s32.totalorder %s71, %s73
      %p77 = scmp.eq.s32.totalorder %s16, 0
      %p78 = por %p76, %p77
      %p79 = scmp.ne.s32.totalorder %s71, %s73
      %p80 = scmp.eq.s32.totalorder %s21, 1
      %p81 = por %p79, %p80
      %p82 = scmp.ne.s32.totalorder %s73, %s74
      %p83 = scmp.eq.s32.totalorder %s21, 0
      %p84 = por %p82, %p83
      %p85 = scmp.ne.s32.totalorder %s73, %s74
      %p86 = scmp.eq.s32.totalorder %s22, 1
      %p87 = por %p85, %p86
      %p89 = scmp.ne.s32.totalorder %s74, %s88
      %p90 = scmp.eq.s32.totalorder %s22, 0
      %p91 = por %p89, %p90
      %s93 = sadd.s32 %s92, 1
      %p96 = scmp.eq.s32.totalorder %s16, 1
      %p97 = scmp.ne.s32.totalorder %s92, %s94
      %p98 = scmp.eq.s32.totalorder %s16, 0
      %p99 = por %p97, %p98
      %p100 = scmp.ne.s32.totalorder %s92, %s94
      %p101 = scmp.eq.s32.totalorder %s21, 1
      %p102 = por %p100, %p101
      %p103 = scmp.ne.s32.totalorder %s94, %s95
      %p104 = scmp.eq.s32.totalorder %s21, 0
      %p105 = por %p103, %p104
      %p106 = scmp.ne.s32.totalorder %s94, %s95
      %p107 = scmp.eq.s32.totalorder %s22, 1
      %p108 = por %p106, %p107
      %p110 = scmp.ne.s32.totalorder %s95, %s109
      %p111 = scmp.eq.s32.totalorder %s22, 0
      %p112 = por %p110, %p111
      %s114 = sadd.s32 %s113, 1
      %p117 = scmp.eq.s32.totalorder %s16, 1
      %p118 = scmp.ne.s32.totalorder %s113, %s115
      %p119 = scmp.eq.s32.totalorder %s16, 0
      %p120 = por %p118, %p119
      %p121 = scmp.ne.s32.totalorder %s113, %s115
      %p122 = scmp.eq.s32.totalorder %s21, 1
      %p123 = por %p121, %p122
      %p124 = scmp.ne.s32.totalorder %s115, %s116
      %p125 = scmp.eq.s32.totalorder %s21, 0
      %p126 = por %p124, %p125
      %p127 = scmp.ne.s32.totalorder %s115, %s116
      %p128 = scmp.eq.s32.totalorder %s22, 1
      %p129 = por %p127, %p128
      %p131 = scmp.ne.s32.totalorder %s116, %s130
      %p132 = scmp.eq.s32.totalorder %s22, 0
      %p133 = por %p131, %p132
      %s135 = sadd.s32 %s134, 1
      %p138 = scmp.eq.s32.totalorder %s16, 1
      %p139 = scmp.ne.s32.totalorder %s134, %s136
      %p140 = scmp.eq.s32.totalorder %s16, 0
      %p141 = por %p139, %p140
      %p142 = scmp.ne.s32.totalorder %s134, %s136
      %p143 = scmp.eq.s32.totalorder %s21, 1
      %p144 = por %p142, %p143
      %p145 = scmp.ne.s32.totalorder %s136, %s137
      %p146 = scmp.eq.s32.totalorder %s21, 0
      %p147 = por %p145, %p146
      %p148 = scmp.ne.s32.totalorder %s136, %s137
      %p149 = scmp.eq.s32.totalorder %s22, 1
      %p150 = por %p148, %p149
      %p152 = scmp.ne.s32.totalorder %s137, %s151
      %p153 = scmp.eq.s32.totalorder %s22, 0
      %p154 = por %p152, %p153
      %s156 = sadd.s32 %s155, 1
      %p159 = scmp.eq.s32.totalorder %s16, 1
      %p160 = scmp.ne.s32.totalorder %s155, %s157
      %p161 = scmp.eq.s32.totalorder %s16, 0
      %p162 = por %p160, %p161
      %p163 = scmp.ne.s32.totalorder %s155, %s157
      %p164 = scmp.eq.s32.totalorder %s21, 1
      %p165 = por %p163, %p164
      %p166 = scmp.ne.s32.totalorder %s157, %s158
      %p167 = scmp.eq.s32.totalorder %s21, 0
      %p168 = por %p166, %p167
      %p169 = scmp.ne.s32.totalorder %s157, %s158
      %p170 = scmp.eq.s32.totalorder %s22, 1
      %p171 = por %p169, %p170
      %p173 = scmp.ne.s32.totalorder %s158, %s172
      %p174 = scmp.eq.s32.totalorder %s22, 0
      %p175 = por %p173, %p174
      %s176 = ssub.s32 %s16, %s23
      %p177 = scmp.eq.s32.totalorder %s176, 0
      %s179 = sadd.s32 %s178, 1
      %s180 = scalar_select %p177, %s178, %s179
      %p183 = pneg %p177
      %p184 = scmp.eq.s32.totalorder %s16, 1
      %p185 = por %p183, %p184
      %p186 = scmp.ne.s32.totalorder %s178, %s181
      %p187 = scmp.eq.s32.totalorder %s16, 0
      %p188 = por %p186, %p187
      %p189 = scmp.ne.s32.totalorder %s178, %s181
      %p190 = scmp.eq.s32.totalorder %s21, 1
      %p191 = por %p189, %p190
      %p192 = scmp.ne.s32.totalorder %s181, %s182
      %p193 = scmp.eq.s32.totalorder %s21, 0
      %p194 = por %p192, %p193
      %p195 = scmp.ne.s32.totalorder %s181, %s182
      %p196 = scmp.eq.s32.totalorder %s22, 1
      %p197 = por %p195, %p196
      %p199 = scmp.ne.s32.totalorder %s182, %s198
      %p200 = scmp.eq.s32.totalorder %s22, 0
      %p201 = por %p199, %p200
      %p202 = scmp.le.s32.totalorder 1, %s16
      %p203 = scmp.lt.s32.totalorder %s16, 3
      %p204 = pnand %p202, %p203
      %p205 = pneg %p204
      // Predicated region
      $region9: #{cbam_forward.1} parent=5 // pred_check
        _
      $region10: #{cbam_forward.1} parent=5 // pred_check_branch
        %207 = sbr.rel (%p204) target = $region12
      $region11: #{cbam_forward.1} parent=5 // pred_region
        %s208 = ssub.s32 %s16, 1
        // Predicated region
        $region13: #{cbam_forward.1} parent=11 // pred_check
          %p209 = pneg %p63
        $region14: #{cbam_forward.1} parent=11 // pred_check_branch
          %211 = sbr.rel (%p209) target = $region16
        $region15: #{cbam_forward.1} parent=11 // pred_region
          _
        $region16: #{cbam_forward.1} parent=11 // pred_fallthru
          _
        // Predicated region
        $region17: #{cbam_forward.1} parent=11 // pred_check
          %p212 = pneg %p84
        $region18: #{cbam_forward.1} parent=11 // pred_check_branch
          %214 = sbr.rel (%p212) target = $region20
        $region19: #{cbam_forward.1} parent=11 // pred_region
          _
        $region20: #{cbam_forward.1} parent=11 // pred_fallthru
          _
        // Predicated region
        $region21: #{cbam_forward.1} parent=11 // pred_check
          %p215 = pneg %p105
        $region22: #{cbam_forward.1} parent=11 // pred_check_branch
          %217 = sbr.rel (%p215) target = $region24
        $region23: #{cbam_forward.1} parent=11 // pred_region
          _
        $region24: #{cbam_forward.1} parent=11 // pred_fallthru
          _
        // Predicated region
        $region25: #{cbam_forward.1} parent=11 // pred_check
          %p218 = pneg %p126
        $region26: #{cbam_forward.1} parent=11 // pred_check_branch
          %220 = sbr.rel (%p218) target = $region28
        $region27: #{cbam_forward.1} parent=11 // pred_region
          _
        $region28: #{cbam_forward.1} parent=11 // pred_fallthru
          _
        // Predicated region
        $region29: #{cbam_forward.1} parent=11 // pred_check
          %p221 = pneg %p147
        $region30: #{cbam_forward.1} parent=11 // pred_check_branch
          %223 = sbr.rel (%p221) target = $region32
        $region31: #{cbam_forward.1} parent=11 // pred_region
          %s225 = ssub.s32 16384, 16384
          %226 = vsyncadd [#allocation4], %s225
          %s227 = sshll.u32 [#allocation3], 4
          %s228 = int_to_ptr.vmem [resolvable:$true] %s227
          %233 = dma.hbm_to_vmem [thread:$0]  %s5, 16384, %s228, [#allocation4], 256, 256, 16
        $region32: #{cbam_forward.1} parent=11 // pred_fallthru
          _
        // Predicated region
        $region33: #{cbam_forward.1} parent=11 // pred_check
          %p234 = pneg %p168
        $region34: #{cbam_forward.1} parent=11 // pred_check_branch
          %236 = sbr.rel (%p234) target = $region36
        $region35: #{cbam_forward.1} parent=11 // pred_region
          _
        $region36: #{cbam_forward.1} parent=11 // pred_fallthru
          _
      $region12: #{cbam_forward.1} parent=5 // pred_fallthru
        _
      %p237 = scmp.lt.s32.totalorder %s16, 2
      // Predicated region
      $region37: #{cbam_forward.1} parent=5 // pred_check
        %p238 = pneg %p237
      $region38: #{cbam_forward.1} parent=5 // pred_check_branch
        %240 = sbr.rel (%p238) target = $region40
      $region39: #{cbam_forward.1} parent=5 // pred_region
        // Predicated region
        $region41: #{cbam_forward.1} parent=39 // pred_check
          %p241 = pneg %p36
        $region42: #{cbam_forward.1} parent=39 // pred_check_branch
          %243 = sbr.rel (%p241) target = $region44
        $region43: #{cbam_forward.1} parent=39 // pred_region
          %p244 = scmp.lt.s32.totalorder %s16, 1
          %s245 = scalar_select %p244, %s16, 1
          %s246 = smul.addr %s245, 8
          %s247 = smul.addr %s246, 8
          %s248 = scalar_lea.vmem %s0, %s247
        $region44: #{cbam_forward.1} parent=39 // pred_fallthru
          _
      $region40: #{cbam_forward.1} parent=5 // pred_fallthru
        _
      %p249 = scmp.le.s32.totalorder 1, %s16
      %p250 = scmp.lt.s32.totalorder %s16, 3
      %p251 = pnand %p249, %p250
      %p252 = pneg %p251
      // Predicated region
      $region45: #{cbam_forward.1} parent=5 // pred_check
        _
      $region46: #{cbam_forward.1} parent=5 // pred_check_branch
        %254 = sbr.rel (%p251) target = $region48
      $region47: #{cbam_forward.1} parent=5 // pred_region
        %s255 = ssub.s32 %s16, 1
        // Predicated region
        $region49: #{cbam_forward.1} parent=47 // pred_check
          %p256 = pneg %p147
        $region50: #{cbam_forward.1} parent=47 // pred_check_branch
          %258 = sbr.rel (%p256) target = $region52
        $region51: #{cbam_forward.1} parent=47 // pred_region
          %259 = dma.done [#allocation4], 16384
        $region52: #{cbam_forward.1} parent=47 // pred_fallthru
          _
        %p260 = scmp.lt.s32.totalorder %s21, 1
        %s261 = scalar_select %p260, %s21, 1
        %s262 = smul.addr %s261, 8
        %s263 = smul.addr %s262, 8
        %s264 = scalar_lea.vmem %s0, %s263
        %p265 = pneg %p42
        %p266 = pneg %p39
        %p267 = pneg %p63
        %p268 = pneg %p60
        %p269 = pneg %p84
        %p270 = pneg %p81
        %p271 = pneg %p105
        %p272 = pneg %p102
        %p273 = pneg %p126
        %p274 = pneg %p123
        %p275 = pneg %p147
        %p276 = pneg %p144
        %p277 = pneg %p168
        %p278 = pneg %p165
        %p279 = pneg %p194
        %p280 = pneg %p191
        %p281 = scmp.lt.s32.totalorder %s21, 1
        %s282 = scalar_select %p281, %s21, 1
        %s283 = smul.addr %s282, 8
        %s284 = smul.addr %s283, 8
        %s285 = scalar_lea.vmem %s7, %s284
        %p286 = scmp.lt.s32.totalorder %s21, 1
        %s287 = scalar_select %p286, %s21, 1
        %s288 = smul.addr %s287, 8
        %s289 = smul.addr %s288, 8
        %s290 = scalar_lea.vmem %s0, %s289
        %p291 = scmp.lt.s32.totalorder %s21, 1
        %s292 = scalar_select %p291, %s21, 1
        %s293 = smul.addr %s292, 8
        %s294 = smul.addr %s293, 8
        %s295 = scalar_lea.vmem %s7, %s294
        %v296 = vld [vmem:[%s290] sm:$0xff]
        %v297 = vld [vmem:[%s290 + $0x8] sm:$0xff]
        %v298 = vld [vmem:[%s290 + $0x10] sm:$0xff]
        %v299 = vld [vmem:[%s290 + $0x18] sm:$0xff]
        %v300 = vld [vmem:[%s290 + $0x20] sm:$0xff]
        %v301 = vld [vmem:[%s290 + $0x28] sm:$0xff]
        %v302 = vld [vmem:[%s290 + $0x30] sm:$0xff]
        %v303 = vld [vmem:[%s290 + $0x38] sm:$0xff]
        %v304 = vadd.f32 %v296, %v297
        %305 = vadd.xlane.f32.xlu0 %v304
        %v306 = vpop.xlane.xlu0 %305
        %v307 = vadd.f32 %v298, %v299
        %308 = vadd.xlane.f32.xlu0 %v307
        %v309 = vpop.xlane.xlu0 %308
        %v310 = vadd.f32 %v300, %v301
        %311 = vadd.xlane.f32.xlu0 %v310
        %v312 = vpop.xlane.xlu0 %311
        %v313 = vadd.f32 %v302, %v303
        %314 = vadd.xlane.f32.xlu0 %v313
        %v315 = vpop.xlane.xlu0 %314
        %v316 = vrcp.pop 256.0
        %v317 = vmul.f32 %v306, %v316
        %v318 = vmul.f32 %v309, %v316
        %v319 = vmul.f32 %v312, %v316
        %v320 = vmul.f32 %v315, %v316
        %v321 = vmax.f32 %v296, %v297
        %322 = vmax.xlane.f32.xlu0 %v321
        %v323 = vpop.xlane.xlu0 %322
        %v324 = vmax.f32 %v298, %v299
        %325 = vmax.xlane.f32.xlu0 %v324
        %v326 = vpop.xlane.xlu0 %325
        %v327 = vmax.f32 %v300, %v301
        %328 = vmax.xlane.f32.xlu0 %v327
        %v329 = vpop.xlane.xlu0 %328
        %v330 = vmax.f32 %v302, %v303
        %331 = vmax.xlane.f32.xlu0 %v330
        %v332 = vpop.xlane.xlu0 %331
        %v333 = vld [vmem:[%s1] sm:$0xff]
        %v334 = vld [vmem:[%s1 + $0x8] sm:$0xff]
        %v335 = vld [vmem:[%s1 + $0x10] sm:$0xff]
        %v336 = vld [vmem:[%s1 + $0x18] sm:$0xff]
        %v337 = vmul.f32 %v333, %v317
        %v338 = vmul.f32 %v334, %v318
        %v339 = vmul.f32 %v335, %v319
        %v340 = vmul.f32 %v336, %v320
        %vm341 = vcmask 15360
        %v342 = vsel %vm341, %v337, 0.0
        %v343 = vsel %vm341, %v338, 0.0
        %v344 = vadd.f32 %v342, %v343
        %v345 = vsel %vm341, %v339, 0.0
        %v346 = vadd.f32 %v344, %v345
        %v347 = vsel %vm341, %v340, 0.0
        %v348 = vadd.f32 %v346, %v347
        %v349 = vrot.slane %v348, 4
        %v350 = vadd.f32 %v348, %v349
        %v351 = vrot.slane %v350, 2
        %v352 = vadd.f32 %v350, %v351
        %v353 = vrot.slane %v352, 1
        %v354 = vadd.f32 %v352, %v353
        %v355 = vld [vmem:[%s2] sm:$0x1]
        %v356 = vadd.f32 %v354, %v355
        %v357 = vmax.f32 %v356, 0.0
        %v358 = vmul.f32 %v333, %v323
        %v359 = vmul.f32 %v334, %v326
        %v360 = vmul.f32 %v335, %v329
        %v361 = vmul.f32 %v336, %v332
        %v362 = vsel %vm341, %v358, 0.0
        %v363 = vsel %vm341, %v359, 0.0
        %v364 = vadd.f32 %v362, %v363
        %v365 = vsel %vm341, %v360, 0.0
        %v366 = vadd.f32 %v364, %v365
        %v367 = vsel %vm341, %v361, 0.0
        %v368 = vadd.f32 %v366, %v367
        %v369 = vrot.slane %v368, 4
        %v370 = vadd.f32 %v368, %v369
        %v371 = vrot.slane %v370, 2
        %v372 = vadd.f32 %v370, %v371
        %v373 = vrot.slane %v372, 1
        %v374 = vadd.f32 %v372, %v373
        %v375 = vadd.f32 %v374, %v355
        %v376 = vmax.f32 %v375, 0.0
        %v377 = vadd.f32 %v357, %v376
        %v378 = vld [vmem:[%s3] sm:$0xff]
        %v379 = vld [vmem:[%s3 + $0x8] sm:$0xff]
        %v380 = vld [vmem:[%s3 + $0x10] sm:$0xff]
        %v381 = vld [vmem:[%s3 + $0x18] sm:$0xff]
        %v382 = vlaneseq
        %v383 = vshrl.u32 %v382, 7
        %v384 = vsub.s32 0, %v383
        %v385 = vrot.slane %v377, %v384
        %v386 = vmul.f32 %v378, %v385
        %v387 = vmul.f32 %v379, %v385
        %v388 = vmul.f32 %v380, %v385
        %v389 = vmul.f32 %v381, %v385
        %v390 = vsel %vm341, %v386, 0.0
        %391 = vadd.xlane.f32.xlu0 %v390
        %v392 = vpop.xlane.xlu0 %391
        %v393 = vsel %vm341, %v387, 0.0
        %394 = vadd.xlane.f32.xlu0 %v393
        %v395 = vpop.xlane.xlu0 %394
        %v396 = vsel %vm341, %v388, 0.0
        %397 = vadd.xlane.f32.xlu0 %v396
        %v398 = vpop.xlane.xlu0 %397
        %v399 = vsel %vm341, %v389, 0.0
        %400 = vadd.xlane.f32.xlu0 %v399
        %v401 = vpop.xlane.xlu0 %400
        %v402 = vld [vmem:[%s4] sm:$0xff]
        %v403 = vld [vmem:[%s4 + $0x8] sm:$0xff]
        %v404 = vld [vmem:[%s4 + $0x10] sm:$0xff]
        %v405 = vld [vmem:[%s4 + $0x18] sm:$0xff]
        %v406 = vmul.f32 %v402, 2.0
        %v407 = vmul.f32 %v403, 2.0
        %v408 = vmul.f32 %v404, 2.0
        %v409 = vmul.f32 %v405, 2.0
        %v410 = vadd.f32 %v392, %v406
        %v411 = vadd.f32 %v395, %v407
        %v412 = vadd.f32 %v398, %v408
        %v413 = vadd.f32 %v401, %v409
        %v414 = vsub.f32 0.0, %v410
        %v415 = vsub.f32 0.0, %v411
        %v416 = vsub.f32 0.0, %v412
        %v417 = vsub.f32 0.0, %v413
        %v418 = vmul.f32 %v414, 1.442695
        %v419 = vpow.pop %v418
        %v420 = vmul.f32 %v415, 1.442695
        %v421 = vpow.pop %v420
        %v422 = vmul.f32 %v416, 1.442695
        %v423 = vpow.pop %v422
        %v424 = vmul.f32 %v417, 1.442695
        %v425 = vpow.pop %v424
        %v426 = vadd.f32 %v419, 1.0
        %v427 = vadd.f32 %v421, 1.0
        %v428 = vadd.f32 %v423, 1.0
        %v429 = vadd.f32 %v425, 1.0
        %v430 = vrcp.pop %v426
        %v431 = vrcp.pop %v427
        %v432 = vrcp.pop %v428
        %v433 = vrcp.pop %v429
        %435 = vset.pattern.permute.xlu0 0
        %436 = vperm.xlu0 %435, %v430
        %v437 = vpop.permute.xlu0 %436
        %440 = vset.pattern.permute.xlu0 0
        %441 = vperm.xlu0 %440, %v431
        %v442 = vpop.permute.xlu0 %441
        %445 = vset.pattern.permute.xlu0 0
        %446 = vperm.xlu0 %445, %v432
        %v447 = vpop.permute.xlu0 %446
        %450 = vset.pattern.permute.xlu0 0
        %451 = vperm.xlu0 %450, %v433
        %v452 = vpop.permute.xlu0 %451
        %v454 = vmul.f32 %v437, %v296
        %v455 = vmul.f32 %v437, %v297
        %v456 = vmul.f32 %v442, %v298
        %v457 = vmul.f32 %v442, %v299
        %v458 = vmul.f32 %v447, %v300
        %v459 = vmul.f32 %v447, %v301
        %v460 = vmul.f32 %v452, %v302
        %v461 = vmul.f32 %v452, %v303
        %v462 = vadd.f32 %v454, %v456
        %v463 = vadd.f32 %v462, %v458
        %v464 = vadd.f32 %v463, %v460
        %v465 = vrot.slane %v464, 4
        %v466 = vadd.f32 %v464, %v465
        %v467 = vrot.slane %v466, 2
        %v468 = vadd.f32 %v466, %v467
        %v469 = vrot.slane %v468, 1
        %v470 = vadd.f32 %v468, %v469
        %v471 = vadd.f32 %v455, %v457
        %v472 = vadd.f32 %v471, %v459
        %v473 = vadd.f32 %v472, %v461
        %v474 = vrot.slane %v473, 4
        %v475 = vadd.f32 %v473, %v474
        %v476 = vrot.slane %v475, 2
        %v477 = vadd.f32 %v475, %v476
        %v478 = vrot.slane %v477, 1
        %v479 = vadd.f32 %v477, %v478
        %v480 = vrcp.pop 32.0
        %v481 = vmul.f32 %v470, %v480
        %v482 = vmul.f32 %v479, %v480
        %v483 = vmax.f32 %v454, %v458
        %v484 = vmax.f32 %v456, %v460
        %v485 = vmax.f32 %v483, %v484
        %v486 = vrot.slane %v485, 4
        %v487 = vmax.f32 %v485, %v486
        %v488 = vrot.slane %v487, 2
        %v489 = vmax.f32 %v487, %v488
        %v490 = vrot.slane %v489, 1
        %v491 = vmax.f32 %v489, %v490
        %v492 = vmax.f32 %v455, %v459
        %v493 = vmax.f32 %v457, %v461
        %v494 = vmax.f32 %v492, %v493
        %v495 = vrot.slane %v494, 4
        %v496 = vmax.f32 %v494, %v495
        %v497 = vrot.slane %v496, 2
        %v498 = vmax.f32 %v496, %v497
        %v499 = vrot.slane %v498, 1
        %v500 = vmax.f32 %v498, %v499
        %v501 = vld [vmem:[#allocation3] sm:$0xff]
        %v502 = vld [vmem:[#allocation3 + $0x8] sm:$0xff]
        %v503 = vld [vmem:[#allocation3 + $0x10] sm:$0xff]
        %v504 = vld [vmem:[#allocation3 + $0x18] sm:$0xff]
        %v505 = vld [vmem:[#allocation3 + $0x20] sm:$0xff]
        %v506 = vld [vmem:[#allocation3 + $0x28] sm:$0xff]
        %v507 = vld [vmem:[#allocation3 + $0x30] sm:$0xff]
        %v508 = vld [vmem:[#allocation3 + $0x38] sm:$0xff]
        %v509 = vld [vmem:[#allocation3 + $0x40] sm:$0xff]
        %v510 = vld [vmem:[#allocation3 + $0x48] sm:$0xff]
        %v511 = vld [vmem:[#allocation3 + $0x50] sm:$0xff]
        %v512 = vld [vmem:[#allocation3 + $0x58] sm:$0xff]
        %v513 = vld [vmem:[#allocation3 + $0x60] sm:$0xff]
        %v514 = vld [vmem:[#allocation3 + $0x68] sm:$0xff]
        %v515 = vld [vmem:[#allocation3 + $0x70] sm:$0xff]
        %v516 = vld [vmem:[#allocation3 + $0x78] sm:$0xff]
        %v517 = vld [vmem:[#allocation3 + $0x80] sm:$0xff]
        %v518 = vld [vmem:[#allocation3 + $0x88] sm:$0xff]
        %v519 = vld [vmem:[#allocation3 + $0x90] sm:$0xff]
        %v520 = vld [vmem:[#allocation3 + $0x98] sm:$0xff]
        %v521 = vld [vmem:[#allocation3 + $0xa0] sm:$0xff]
        %v522 = vld [vmem:[#allocation3 + $0xa8] sm:$0xff]
        %v523 = vld [vmem:[#allocation3 + $0xb0] sm:$0xff]
        %v524 = vld [vmem:[#allocation3 + $0xb8] sm:$0xff]
        %v525 = vld [vmem:[#allocation3 + $0xc0] sm:$0xff]
        %v526 = vld [vmem:[#allocation3 + $0xc8] sm:$0xff]
        %v527 = vld [vmem:[#allocation3 + $0xd0] sm:$0xff]
        %v528 = vld [vmem:[#allocation3 + $0xd8] sm:$0xff]
        %v529 = vld [vmem:[#allocation3 + $0xe0] sm:$0xff]
        %v530 = vld [vmem:[#allocation3 + $0xe8] sm:$0xff]
        %v531 = vld [vmem:[#allocation3 + $0xf0] sm:$0xff]
        %v532 = vld [vmem:[#allocation3 + $0xf8] sm:$0xff]
        %v533 = vld [vmem:[#allocation3 + $0x100] sm:$0xff]
        %v534 = vld [vmem:[#allocation3 + $0x108] sm:$0xff]
        %v535 = vld [vmem:[#allocation3 + $0x110] sm:$0xff]
        %v536 = vld [vmem:[#allocation3 + $0x118] sm:$0xff]
        %v537 = vld [vmem:[#allocation3 + $0x120] sm:$0xff]
        %v538 = vld [vmem:[#allocation3 + $0x128] sm:$0xff]
        %v539 = vld [vmem:[#allocation3 + $0x130] sm:$0xff]
        %v540 = vld [vmem:[#allocation3 + $0x138] sm:$0xff]
        %v541 = vld [vmem:[#allocation3 + $0x140] sm:$0xff]
        %v542 = vld [vmem:[#allocation3 + $0x148] sm:$0xff]
        %v543 = vld [vmem:[#allocation3 + $0x150] sm:$0xff]
        %v544 = vld [vmem:[#allocation3 + $0x158] sm:$0xff]
        %v545 = vld [vmem:[#allocation3 + $0x160] sm:$0xff]
        %v546 = vld [vmem:[#allocation3 + $0x168] sm:$0xff]
        %v547 = vld [vmem:[#allocation3 + $0x170] sm:$0xff]
        %v548 = vld [vmem:[#allocation3 + $0x178] sm:$0xff]
        %v549 = vld [vmem:[#allocation3 + $0x180] sm:$0xff]
        %v550 = vld [vmem:[#allocation3 + $0x188] sm:$0xff]
        %v551 = vld [vmem:[#allocation3 + $0x190] sm:$0xff]
        %v552 = vld [vmem:[#allocation3 + $0x198] sm:$0xff]
        %v553 = vld [vmem:[#allocation3 + $0x1a0] sm:$0xff]
        %v554 = vld [vmem:[#allocation3 + $0x1a8] sm:$0xff]
        %v555 = vld [vmem:[#allocation3 + $0x1b0] sm:$0xff]
        %v556 = vld [vmem:[#allocation3 + $0x1b8] sm:$0xff]
        %v557 = vld [vmem:[#allocation3 + $0x1c0] sm:$0xff]
        %v558 = vld [vmem:[#allocation3 + $0x1c8] sm:$0xff]
        %v559 = vld [vmem:[#allocation3 + $0x1d0] sm:$0xff]
        %v560 = vld [vmem:[#allocation3 + $0x1d8] sm:$0xff]
        %v561 = vld [vmem:[#allocation3 + $0x1e0] sm:$0xff]
        %v562 = vld [vmem:[#allocation3 + $0x1e8] sm:$0xff]
        %v563 = vld [vmem:[#allocation3 + $0x1f0] sm:$0xff]
        %v564 = vld [vmem:[#allocation3 + $0x1f8] sm:$0xff]
        %v565 = vld [vmem:[#allocation3 + $0x200] sm:$0xff]
        %v566 = vld [vmem:[#allocation3 + $0x208] sm:$0xff]
        %v567 = vld [vmem:[#allocation3 + $0x210] sm:$0xff]
        %v568 = vld [vmem:[#allocation3 + $0x218] sm:$0xff]
        %v569 = vld [vmem:[#allocation3 + $0x220] sm:$0xff]
        %v570 = vld [vmem:[#allocation3 + $0x228] sm:$0xff]
        %v571 = vld [vmem:[#allocation3 + $0x230] sm:$0xff]
        %v572 = vld [vmem:[#allocation3 + $0x238] sm:$0xff]
        %v573 = vld [vmem:[#allocation3 + $0x240] sm:$0xff]
        %v574 = vld [vmem:[#allocation3 + $0x248] sm:$0xff]
        %v575 = vld [vmem:[#allocation3 + $0x250] sm:$0xff]
        %v576 = vld [vmem:[#allocation3 + $0x258] sm:$0xff]
        %v577 = vld [vmem:[#allocation3 + $0x260] sm:$0xff]
        %v578 = vld [vmem:[#allocation3 + $0x268] sm:$0xff]
        %v579 = vld [vmem:[#allocation3 + $0x270] sm:$0xff]
        %v580 = vld [vmem:[#allocation3 + $0x278] sm:$0xff]
        %v581 = vld [vmem:[#allocation3 + $0x280] sm:$0xff]
        %v582 = vld [vmem:[#allocation3 + $0x288] sm:$0xff]
        %v583 = vld [vmem:[#allocation3 + $0x290] sm:$0xff]
        %v584 = vld [vmem:[#allocation3 + $0x298] sm:$0xff]
        %v585 = vld [vmem:[#allocation3 + $0x2a0] sm:$0xff]
        %v586 = vld [vmem:[#allocation3 + $0x2a8] sm:$0xff]
        %v587 = vld [vmem:[#allocation3 + $0x2b0] sm:$0xff]
        %v588 = vld [vmem:[#allocation3 + $0x2b8] sm:$0xff]
        %v589 = vld [vmem:[#allocation3 + $0x2c0] sm:$0xff]
        %v590 = vld [vmem:[#allocation3 + $0x2c8] sm:$0xff]
        %v591 = vld [vmem:[#allocation3 + $0x2d0] sm:$0xff]
        %v592 = vld [vmem:[#allocation3 + $0x2d8] sm:$0xff]
        %v593 = vld [vmem:[#allocation3 + $0x2e0] sm:$0xff]
        %v594 = vld [vmem:[#allocation3 + $0x2e8] sm:$0xff]
        %v595 = vld [vmem:[#allocation3 + $0x2f0] sm:$0xff]
        %v596 = vld [vmem:[#allocation3 + $0x2f8] sm:$0xff]
        %v597 = vld [vmem:[#allocation3 + $0x300] sm:$0xff]
        %v598 = vld [vmem:[#allocation3 + $0x308] sm:$0xff]
        %v599 = vld [vmem:[#allocation3 + $0x310] sm:$0xff]
        %v600 = vld [vmem:[#allocation3 + $0x318] sm:$0xff]
        %v601 = vld [vmem:[#allocation3 + $0x320] sm:$0xff]
        %v602 = vld [vmem:[#allocation3 + $0x328] sm:$0xff]
        %v603 = vld [vmem:[#allocation3 + $0x330] sm:$0xff]
        %v604 = vld [vmem:[#allocation3 + $0x338] sm:$0xff]
        %v605 = vld [vmem:[#allocation3 + $0x340] sm:$0xff]
        %v606 = vld [vmem:[#allocation3 + $0x348] sm:$0xff]
        %v607 = vld [vmem:[#allocation3 + $0x350] sm:$0xff]
        %v608 = vld [vmem:[#allocation3 + $0x358] sm:$0xff]
        %v609 = vld [vmem:[#allocation3 + $0x360] sm:$0xff]
        %v610 = vld [vmem:[#allocation3 + $0x368] sm:$0xff]
        %v611 = vld [vmem:[#allocation3 + $0x370] sm:$0xff]
        %v612 = vld [vmem:[#allocation3 + $0x378] sm:$0xff]
        %v613 = vld [vmem:[#allocation3 + $0x380] sm:$0xff]
        %v614 = vld [vmem:[#allocation3 + $0x388] sm:$0xff]
        %v615 = vld [vmem:[#allocation3 + $0x390] sm:$0xff]
        %v616 = vld [vmem:[#allocation3 + $0x398] sm:$0xff]
        %v617 = vld [vmem:[#allocation3 + $0x3a0] sm:$0xff]
        %v618 = vld [vmem:[#allocation3 + $0x3a8] sm:$0xff]
        %v619 = vld [vmem:[#allocation3 + $0x3b0] sm:$0xff]
        %v620 = vld [vmem:[#allocation3 + $0x3b8] sm:$0xff]
        %v621 = vld [vmem:[#allocation3 + $0x3c0] sm:$0xff]
        %v622 = vld [vmem:[#allocation3 + $0x3c8] sm:$0xff]
        %v623 = vld [vmem:[#allocation3 + $0x3d0] sm:$0xff]
        %v624 = vld [vmem:[#allocation3 + $0x3d8] sm:$0xff]
        %v625 = vld [vmem:[#allocation3 + $0x3e0] sm:$0xff]
        %v626 = vld [vmem:[#allocation3 + $0x3e8] sm:$0xff]
        %v627 = vld [vmem:[#allocation3 + $0x3f0] sm:$0xff]
        %v628 = vld [vmem:[#allocation3 + $0x3f8] sm:$0xff]
        %v629 = vld [vmem:[#allocation2] sm:$0x1]
        %631 = vset.pattern.permute.xlu0 0
        %632 = vperm.xlu0 %631, %v629
        %v633 = vpop.permute.xlu0 %632
        %v635 = vlaneseq
        %v636 = vshrl.u32 %v635, 7
        %v637 = vsub.s32 0, %v636
        %v638 = vrot.slane %v633, %v637
        %639 = vmatprep.subr.mxu0 %v502
        %640 = vmatpush1.msra.mxu0 %v501
        %641 = vmatprep.subr.mxu0 %v504
        %642 = vmatpush1.msra.mxu0 %v503
        %643 = vmatprep.subr.mxu0 %v506
        %644 = vmatpush1.msra.mxu0 %v505
        %645 = vmatprep.subr.mxu0 %v508
        %646 = vmatpush1.msra.mxu0 %v507
        %647 = vmatprep.subr.mxu0 %v510
        %648 = vmatpush1.msra.mxu0 %v509
        %649 = vmatprep.subr.mxu0 %v512
        %650 = vmatpush1.msra.mxu0 %v511
        %651 = vmatprep.subr.mxu0 %v514
        %652 = vmatpush1.msra.mxu0 %v513
        %653 = vmatprep.subr.mxu0 %v516
        %654 = vmatpush1.msra.mxu0 %v515
        %655 = vmatprep.subr.mxu0 %v518
        %656 = vmatpush1.msra.mxu0 %v517
        %657 = vmatprep.subr.mxu0 %v520
        %658 = vmatpush1.msra.mxu0 %v519
        %659 = vmatprep.subr.mxu0 %v522
        %660 = vmatpush1.msra.mxu0 %v521
        %661 = vmatprep.subr.mxu0 %v524
        %662 = vmatpush1.msra.mxu0 %v523
        %663 = vmatprep.subr.mxu0 %v526
        %664 = vmatpush1.msra.mxu0 %v525
        %665 = vmatprep.subr.mxu0 %v528
        %666 = vmatpush1.msra.mxu0 %v527
        %667 = vmatprep.subr.mxu0 %v530
        %668 = vmatpush1.msra.mxu0 %v529
        %669 = vmatprep.subr.mxu0 %v532
        %670 = vmatpush1.msra.mxu0 %v531
        %671 = vmatprep.subr.mxu0 %v534
        %672 = vmatpush1.msra.mxu0 %v533
        %673 = vmatprep.subr.mxu0 %v536
        %674 = vmatpush1.msra.mxu0 %v535
        %675 = vmatprep.subr.mxu0 %v538
        %676 = vmatpush1.msra.mxu0 %v537
        %677 = vmatprep.subr.mxu0 %v540
        %678 = vmatpush1.msra.mxu0 %v539
        %679 = vmatprep.subr.mxu0 %v542
        %680 = vmatpush1.msra.mxu0 %v541
        %681 = vmatprep.subr.mxu0 %v544
        %682 = vmatpush1.msra.mxu0 %v543
        %683 = vmatprep.subr.mxu0 %v546
        %684 = vmatpush1.msra.mxu0 %v545
        %685 = vmatprep.subr.mxu0 %v548
        %686 = vmatpush1.msra.mxu0 %v547
        %687 = vmatprep.subr.mxu0 %v550
        %688 = vmatpush1.msra.mxu0 %v549
        %689 = vmatprep.subr.mxu0 %v552
        %690 = vmatpush1.msra.mxu0 %v551
        %691 = vmatprep.subr.mxu0 %v554
        %692 = vmatpush1.msra.mxu0 %v553
        %693 = vmatprep.subr.mxu0 %v556
        %694 = vmatpush1.msra.mxu0 %v555
        %695 = vmatprep.subr.mxu0 %v558
        %696 = vmatpush1.msra.mxu0 %v557
        %697 = vmatprep.subr.mxu0 %v560
        %698 = vmatpush1.msra.mxu0 %v559
        %699 = vmatprep.subr.mxu0 %v562
        %700 = vmatpush1.msra.mxu0 %v561
        %701 = vmatprep.subr.mxu0 %v564
        %702 = vmatpush1.msra.mxu0 %v563
        %703 = vmatprep.mubr.f32.mxu0 %v482
        %704 = vmatmul.mubr.f32.gmra.mrb[0].mxu0 %v481
        %v705 = vpop.f32.mrb[0].mxu0
        %v706 = vadd.f32 %v638, %v705
        %v707 = vpop.f32.mrb[0].mxu0
        %v708 = vadd.f32 %v638, %v707
        %709 = vdwg.mxu0
        %710 = vmatprep.subr.mxu0 %v566
        %711 = vmatpush1.msra.mxu0 %v565
        %712 = vmatprep.subr.mxu0 %v568
        %713 = vmatpush1.msra.mxu0 %v567
        %714 = vmatprep.subr.mxu0 %v570
        %715 = vmatpush1.msra.mxu0 %v569
        %716 = vmatprep.subr.mxu0 %v572
        %717 = vmatpush1.msra.mxu0 %v571
        %718 = vmatprep.subr.mxu0 %v574
        %719 = vmatpush1.msra.mxu0 %v573
        %720 = vmatprep.subr.mxu0 %v576
        %721 = vmatpush1.msra.mxu0 %v575
        %722 = vmatprep.subr.mxu0 %v578
        %723 = vmatpush1.msra.mxu0 %v577
        %724 = vmatprep.subr.mxu0 %v580
        %725 = vmatpush1.msra.mxu0 %v579
        %726 = vmatprep.subr.mxu0 %v582
        %727 = vmatpush1.msra.mxu0 %v581
        %728 = vmatprep.subr.mxu0 %v584
        %729 = vmatpush1.msra.mxu0 %v583
        %730 = vmatprep.subr.mxu0 %v586
        %731 = vmatpush1.msra.mxu0 %v585
        %732 = vmatprep.subr.mxu0 %v588
        %733 = vmatpush1.msra.mxu0 %v587
        %734 = vmatprep.subr.mxu0 %v590
        %735 = vmatpush1.msra.mxu0 %v589
        %736 = vmatprep.subr.mxu0 %v592
        %737 = vmatpush1.msra.mxu0 %v591
        %738 = vmatprep.subr.mxu0 %v594
        %739 = vmatpush1.msra.mxu0 %v593
        %740 = vmatprep.subr.mxu0 %v596
        %741 = vmatpush1.msra.mxu0 %v595
        %742 = vmatprep.subr.mxu0 %v598
        %743 = vmatpush1.msra.mxu0 %v597
        %744 = vmatprep.subr.mxu0 %v600
        %745 = vmatpush1.msra.mxu0 %v599
        %746 = vmatprep.subr.mxu0 %v602
        %747 = vmatpush1.msra.mxu0 %v601
        %748 = vmatprep.subr.mxu0 %v604
        %749 = vmatpush1.msra.mxu0 %v603
        %750 = vmatprep.subr.mxu0 %v606
        %751 = vmatpush1.msra.mxu0 %v605
        %752 = vmatprep.subr.mxu0 %v608
        %753 = vmatpush1.msra.mxu0 %v607
        %754 = vmatprep.subr.mxu0 %v610
        %755 = vmatpush1.msra.mxu0 %v609
        %756 = vmatprep.subr.mxu0 %v612
        %757 = vmatpush1.msra.mxu0 %v611
        %758 = vmatprep.subr.mxu0 %v614
        %759 = vmatpush1.msra.mxu0 %v613
        %760 = vmatprep.subr.mxu0 %v616
        %761 = vmatpush1.msra.mxu0 %v615
        %762 = vmatprep.subr.mxu0 %v618
        %763 = vmatpush1.msra.mxu0 %v617
        %764 = vmatprep.subr.mxu0 %v620
        %765 = vmatpush1.msra.mxu0 %v619
        %766 = vmatprep.subr.mxu0 %v622
        %767 = vmatpush1.msra.mxu0 %v621
        %768 = vmatprep.subr.mxu0 %v624
        %769 = vmatpush1.msra.mxu0 %v623
        %770 = vmatprep.subr.mxu0 %v626
        %771 = vmatpush1.msra.mxu0 %v625
        %772 = vmatprep.subr.mxu0 %v628
        %773 = vmatpush1.msra.mxu0 %v627
        %774 = vmatprep.mubr.f32.mxu0 %v500
        %775 = vmatmul.mubr.f32.gmra.mrb[0].mxu0 %v491
        %v776 = vpop.f32.mrb[0].mxu0
        %v777 = vadd.f32 %v706, %v776
        %v778 = vpop.f32.mrb[0].mxu0
        %v779 = vadd.f32 %v708, %v778
        %780 = vdwg.mxu0
        %v781 = vsub.f32 0.0, %v777
        %v782 = vsub.f32 0.0, %v779
        %v783 = vmul.f32 %v781, 1.442695
        %v784 = vpow.pop %v783
        %v785 = vmul.f32 %v782, 1.442695
        %v786 = vpow.pop %v785
        %v787 = vadd.f32 %v784, 1.0
        %v788 = vadd.f32 %v786, 1.0
        %v789 = vrcp.pop %v787
        %v790 = vrcp.pop %v788
        %v791 = vlaneseq
        %v792 = vshrl.u32 %v791, 7
        %v793 = vsub.s32 0, %v792
        %v794 = vrot.slane %v789, %v793
        %v795 = vlaneseq
        %v796 = vshrl.u32 %v795, 7
        %v797 = vsub.s32 0, %v796
        %v798 = vrot.slane %v790, %v797
        %v799 = vmul.f32 %v794, %v454
        %v800 = vmul.f32 %v798, %v455
        %v801 = vmul.f32 %v794, %v456
        %v802 = vmul.f32 %v798, %v457
        %v803 = vmul.f32 %v794, %v458
        %v804 = vmul.f32 %v798, %v459
        %v805 = vmul.f32 %v794, %v460
        %v806 = vmul.f32 %v798, %v461
        %807 = vst [vmem:[%s295] sm:$0xff] %v799
        %808 = vst [vmem:[%s295 + $0x8] sm:$0xff] %v800
        %809 = vst [vmem:[%s295 + $0x10] sm:$0xff] %v801
        %810 = vst [vmem:[%s295 + $0x18] sm:$0xff] %v802
        %811 = vst [vmem:[%s295 + $0x20] sm:$0xff] %v803
        %812 = vst [vmem:[%s295 + $0x28] sm:$0xff] %v804
        %813 = vst [vmem:[%s295 + $0x30] sm:$0xff] %v805
        %814 = vst [vmem:[%s295 + $0x38] sm:$0xff] %v806
        %p815 = scmp.lt.s32.totalorder %s21, 1
        %s816 = scalar_select %p815, %s21, 1
        %s817 = smul.addr %s816, 8
        %s818 = smul.addr %s817, 8
        %s819 = scalar_lea.vmem %s7, %s818
        // Predicated region
        $region53: #{cbam_forward.1} parent=47 // pred_check
          %p820 = pneg %p191
        $region54: #{cbam_forward.1} parent=47 // pred_check_branch
          %822 = sbr.rel (%p820) target = $region56
        $region55: #{cbam_forward.1} parent=47 // pred_region
          _
        $region56: #{cbam_forward.1} parent=47 // pred_fallthru
          _
      $region48: #{cbam_forward.1} parent=5 // pred_fallthru
        _
      %p823 = scmp.le.s32.totalorder 2, %s16
      // Predicated region
      $region57: #{cbam_forward.1} parent=5 // pred_check
        %p824 = pneg %p823
      $region58: #{cbam_forward.1} parent=5 // pred_check_branch
        %826 = sbr.rel (%p824) target = $region60
      $region59: #{cbam_forward.1} parent=5 // pred_region
        %s827 = ssub.s32 %s16, 2
        // Predicated region
        $region61: #{cbam_forward.1} parent=59 // pred_check
          %p828 = pneg %p197
        $region62: #{cbam_forward.1} parent=59 // pred_check_branch
          %830 = sbr.rel (%p828) target = $region64
        $region63: #{cbam_forward.1} parent=59 // pred_region
          %p831 = scmp.lt.s32.totalorder %s22, 1
          %s832 = scalar_select %p831, %s22, 1
          %s833 = smul.addr %s832, 8
          %s834 = smul.addr %s833, 8
          %s835 = scalar_lea.vmem %s7, %s834
        $region64: #{cbam_forward.1} parent=59 // pred_fallthru
          _
      $region60: #{cbam_forward.1} parent=5 // pred_fallthru
        _
    $region6: #{cbam_forward.1} parent=1 // loop_footer
      %s20 = sadd.s32 1, %s16
    $region7: #{cbam_forward.1} parent=1 // loop_footer_branch
      %15 = sbr.rel target = $region3
    $region8: #{cbam_forward.1} parent=1 // loop_exit
      _
    %836 = vsyncpa [#allocation4], 1
    %s837 = scalar_lea.sflag [#allocation4], 1
    %838 = vsyncpa %s837, 1

</llo_original>
